<compile_context>
chip_gen: v6e
topology: v6e:2x2x1
jax: 0.10.0
libtpu: 0.0.40
codegen_flags: <defaults>
</compile_context>

<pallas_src>
import math
import jax
import jax.numpy as jnp
from jax.experimental import pallas as pl
from jax.experimental.pallas import tpu as pltpu


_TARGET_BLOCK_BYTES = 4 * 1024 * 1024   # ~4 MiB x/out blocks (good on v7x, fine on v5e/v6e)
_VMEM_LIMIT_FLOOR = 16 * 1024 * 1024
_VMEM_LIMIT_CAP = 40 * 1024 * 1024      # leave headroom under v7x's 64 MiB physical VMEM
_VMEM_MARGIN = 8 * 1024 * 1024          # Mosaic internal scratch / misc headroom


def _pe_add_kernel(x_ref, pe_ref, o_ref):
    # x_ref: (Bt, TR, L); pe_ref: (TR, L) broadcast over batch; fp32 add, cast on store.
    x = x_ref[...].astype(jnp.float32)
    pe = pe_ref[...].astype(jnp.float32)
    o_ref[...] = (x + pe[None, :, :]).astype(o_ref.dtype)


def make_positional_encoding_table(d_model: int, max_len: int = 256) -> jnp.ndarray:
    """Deterministic buffer init, identical to the PyTorch __init__."""
    position = jnp.arange(0, max_len, dtype=jnp.float32)[:, None]              # (max_len, 1)
    div_term = jnp.exp(
        jnp.arange(0, d_model, 2, dtype=jnp.float32) * (-math.log(10000.0) / d_model)
    )                                                                           # (d_model/2,)
    pe = jnp.zeros((max_len, d_model), dtype=jnp.float32)
    pe = pe.at[:, 0::2].set(jnp.sin(position * div_term))
    pe = pe.at[:, 1::2].set(jnp.cos(position * div_term))
    return pe                                                                   # (max_len, d_model)


def _vmem_limit_bytes(x_block_bytes: int, out_block_bytes: int, pe_block_bytes: int) -> int:
    # 2-deep pipeline buffers for x and out, pe block (double-buffered but fetched once).
    ws = 2 * (x_block_bytes + out_block_bytes) + 2 * pe_block_bytes
    return int(min(max(ws + _VMEM_MARGIN, _VMEM_LIMIT_FLOOR), _VMEM_LIMIT_CAP))


def positional_encoding_forward(x: jnp.ndarray, pe: jnp.ndarray, *, donate_x: bool = False) -> jnp.ndarray:
    """x: (B, S, D).  pe: (max_len, D) float32.  Returns x + pe[:S] (broadcast over B).

    Output dtype follows PyTorch promotion: result_type(x.dtype, pe.dtype)."""
    B, S, D = x.shape
    assert pe.shape[0] >= S and pe.shape[1] == D, "pe table too small for this input"

    out_dtype = jnp.result_type(x.dtype, pe.dtype)
    pe_s = pe[:S]                               # kept in its native (fp32) dtype
    x_b = x.dtype.itemsize
    o_b = jnp.dtype(out_dtype).itemsize
    pe_b = pe_s.dtype.itemsize
    blk_b = max(x_b, o_b)

    alias = {}
    if donate_x and out_dtype == x.dtype:
        alias = {0: 0}                          # in-place on x when caller donates it

    if (S * D) % 128 == 0:
        # ---------------- Lane-dense path ----------------
        # Widest lane dim: largest multiple of 128 dividing S*D, capped at 2048.
        f = (S * D) // 128
        d = 1
        for cand in range(min(16, f), 0, -1):
            if f % cand == 0:
                d = cand
                break
        L = 128 * d
        R = (S * D) // L                        # rows of L lanes per batch element
        x2 = x.reshape(B, R, L)
        pe2 = pe_s.reshape(R, L)                # same flattening, broadcast over batch

        rows_target = max(8, _TARGET_BLOCK_BYTES // (L * blk_b))
        if R <= rows_target:
            TR = R
            per_batch = R * L * blk_b
            Bt = min(B, max(1, _TARGET_BLOCK_BYTES // max(1, per_batch)))
        else:
            TR = (rows_target // 8) * 8
            # Prefer a TR that evenly divides R (no masked tail block), but don't
            # shrink below half the target tile.
            cand = TR
            while cand >= 8 and cand * 2 >= TR:
                if R % cand == 0:
                    TR = cand
                    break
                cand -= 8
            Bt = 1
        n_r = pl.cdiv(R, TR)
        n_b = pl.cdiv(B, Bt)

        vmem = _vmem_limit_bytes(Bt * TR * L * x_b, Bt * TR * L * o_b, TR * L * pe_b)

        # Grid: rows outer, batch inner -> pe block index constant across the inner
        # loop, so Pallas elides re-fetching it (pe read exactly once from HBM).
        out2 = pl.pallas_call(
            _pe_add_kernel,
            out_shape=jax.ShapeDtypeStruct((B, R, L), out_dtype),
            grid_spec=pltpu.PrefetchScalarGridSpec(
                num_scalar_prefetch=0,
                grid=(n_r, n_b),
                in_specs=[
                    pl.BlockSpec((Bt, TR, L), lambda ri, bi: (bi, ri, 0)),
                    pl.BlockSpec((TR, L), lambda ri, bi: (ri, 0)),
                ],
                out_specs=pl.BlockSpec((Bt, TR, L), lambda ri, bi: (bi, ri, 0)),
            ),
            compiler_params=pltpu.CompilerParams(
                dimension_semantics=("parallel", "parallel"),
                vmem_limit_bytes=vmem,
            ),
            input_output_aliases=alias,
        )(x2, pe2)
        return out2.reshape(B, S, D)

    # ---------------- Fallback path (S*D not a multiple of 128) ----------------
    # Tile the sequence dim (multiple of 8 sublanes or full extent); D stays full
    # extent so the (8,128) rule is satisfied for any D. Batch is innermost so the
    # pe block is reused across batch rows.
    rows_target = max(8, _TARGET_BLOCK_BYTES // max(1, D * blk_b))
    TS = S if S <= rows_target else max(8, (rows_target // 8) * 8)
    n_s = pl.cdiv(S, TS)
    vmem = _vmem_limit_bytes(TS * D * x_b, TS * D * o_b, TS * D * pe_b)

    return pl.pallas_call(
        _pe_add_kernel,
        out_shape=jax.ShapeDtypeStruct((B, S, D), out_dtype),
        grid_spec=pltpu.PrefetchScalarGridSpec(
            num_scalar_prefetch=0,
            grid=(n_s, B),
            in_specs=[
                pl.BlockSpec((1, TS, D), lambda si, bi: (bi, si, 0)),
                pl.BlockSpec((TS, D), lambda si, bi: (si, 0)),
            ],
            out_specs=pl.BlockSpec((1, TS, D), lambda si, bi: (bi, si, 0)),
        ),
        compiler_params=pltpu.CompilerParams(
            dimension_semantics=("parallel", "parallel"),
            vmem_limit_bytes=vmem,
        ),
        input_output_aliases=alias,
    )(x, pe_s)


if __name__ == "__main__":
    # Small shapes consistent with the module's forward: (batch, seq, d_model)
    B, S, D = 2, 8, 32
    max_len = 256

    key = jax.random.PRNGKey(0)
    x = jax.random.normal(key, (B, S, D), dtype=jnp.float32)

    pe = make_positional_encoding_table(D, max_len)

    out = positional_encoding_forward(x, pe)
    out = jax.block_until_ready(out)

    # Reference check in plain JAX
    ref = x + pe[None, :S, :]
    assert out.shape == (B, S, D)
    assert out.dtype == ref.dtype
    assert jnp.allclose(out, ref, atol=1e-6), "mismatch vs reference"

    print("KERNEL_OK")
</pallas_src>

<mosaic_0001>
module attributes {stable_mosaic.version = 11 : i64} {
  func.func @_pe_add_kernel(%arg0: i32, %arg1: i32, %arg2: memref<2x1x256xf32, #tpu.memory_space<vmem>>, %arg3: memref<1x256xf32, #tpu.memory_space<vmem>>, %arg4: memref<2x1x256xf32, #tpu.memory_space<vmem>>) attributes {dimension_semantics = [#tpu.dimension_semantics<parallel>, #tpu.dimension_semantics<parallel>], iteration_bounds = array<i64: 1, 1>, scalar_prefetch = 0 : i64, scratch_operands = 0 : i64, tpu.core_type = #tpu.core_type<tc>, window_params = [{transform_indices = @transform_0, window_bounds = array<i64: 2, 1, 256>}, {transform_indices = @transform_1, window_bounds = array<i64: 1, 256>}, {transform_indices = @transform_2, window_bounds = array<i64: 2, 1, 256>}]} {
    %c0 = arith.constant 0 : index
    %c0_0 = arith.constant 0 : index
    %c0_1 = arith.constant 0 : index
    %0 = vector.load %arg2[%c0, %c0_0, %c0_1] : memref<2x1x256xf32, #tpu.memory_space<vmem>>, vector<2x1x256xf32>
    %c0_2 = arith.constant 0 : index
    %c0_3 = arith.constant 0 : index
    %1 = vector.load %arg3[%c0_2, %c0_3] : memref<1x256xf32, #tpu.memory_space<vmem>>, vector<1x256xf32>
    %2 = vector.shape_cast %1 : vector<1x256xf32> to vector<1x1x256xf32>
    %3 = vector.broadcast %2 : vector<1x1x256xf32> to vector<2x1x256xf32>
    %4 = arith.addf %0, %3 : vector<2x1x256xf32>
    %c0_4 = arith.constant 0 : index
    %c0_5 = arith.constant 0 : index
    %c0_6 = arith.constant 0 : index
    %5 = vector.load %arg4[%c0_4, %c0_5, %c0_6] : memref<2x1x256xf32, #tpu.memory_space<vmem>>, vector<2x1x256xf32>
    tpu.vector_store %arg4[%c0_4, %c0_5, %c0_6], %4 {strides = array<i32>} : memref<2x1x256xf32, #tpu.memory_space<vmem>>, vector<2x1x256xf32>,
    return
  }
  func.func @transform_0(%arg0: i32, %arg1: i32) -> (i32, i32, i32) {
    %c0_i32 = arith.constant 0 : i32
    %c0_i32_0 = arith.constant 0 : i32
    return %arg1, %arg0, %c0_i32 : i32, i32, i32
  }
  func.func @transform_1(%arg0: i32, %arg1: i32) -> (i32, i32) {
    %c0_i32 = arith.constant 0 : i32
    %c0_i32_0 = arith.constant 0 : i32
    return %arg0, %c0_i32 : i32, i32
  }
  func.func @transform_2(%arg0: i32, %arg1: i32) -> (i32, i32, i32) {
    %c0_i32 = arith.constant 0 : i32
    %c0_i32_0 = arith.constant 0 : i32
    return %arg1, %arg0, %c0_i32 : i32, i32, i32
  }
}

</mosaic_0001>

<llo_original>
// kernel: tpu_custom_call.1
$region0: #{tpu_custom_call.1}
  #allocation0 [shape = 'u32[]', space=smem, size = 0x4, offset = 0x4, fixed_abs, tag = 'smem constant byte address 0x4 - core index']
  #allocation1 [shape = 'u32[144,128]{1,0:T(1,128)}', space=vmem, size = 0x12000, scoped, tag = 'internal scratch']
  %s0 = inlined_call_operand.hbm [shape: f32[2,1,256], index: 0, kind: input, shape index: {}]
  %s1 = inlined_call_operand.hbm [shape: f32[1,256], index: 1, kind: input, shape index: {}]
  %s2 = inlined_call_operand.hbm [shape: f32[2,1,256], index: 2, kind: output, shape index: {}]
  %s3 = sld [smem:[#allocation0]]
  $region26: #{tpu_custom_call.1} parent=0
    _
  %s5 = ssub.s32 1, %s3
  %s6 = scalar_select 0, %s5, %s3
  $region1: #{tpu_custom_call.1} parent=0
    #allocation2 [shape = 'u8[2048]{0}', space=vmem, size = 0x800, scoped, tag = 'input window, operand 0, single buffered']
    #allocation3 [shape = 's32[1]{0}', space=sflag, size = 0x4, scoped, tag = 'scoped memory for tpu_custom_call.1']
    #allocation4 [shape = 's32[1]{0}', space=sflag, size = 0x4, scoped, tag = 'scoped memory for tpu_custom_call.1']
    #allocation5 [shape = 'u8[1024]{0}', space=vmem, size = 0x400, scoped, tag = 'input window, operand 1, single buffered']
    #allocation6 [shape = 's32[1]{0}', space=sflag, size = 0x4, scoped, tag = 'scoped memory for tpu_custom_call.1']
    #allocation7 [shape = 'u8[2048]{0}', space=vmem, size = 0x800, scoped, tag = 'output window, operand 0, single buffered']
    %7 = vsyncpa [#allocation3], 0
    %8 = vsyncpa [#allocation6], 0
    %9 = vsyncpa [#allocation4], 0
    // Predicated region
    $region2: #{tpu_custom_call.1} parent=1 // pred_check
      _
    $region3: #{tpu_custom_call.1} parent=1 // pred_check_branch
      %11 = sbr.rel (0) target = $region5
    $region4: #{tpu_custom_call.1} parent=1 // pred_region
      %s13 = ssub.s32 64, 64
      %14 = vsyncadd [#allocation3], %s13
      %s15 = sshll.u32 [#allocation2], 4
      %s16 = int_to_ptr.vmem [resolvable:$true] %s15
      %21 = dma.hbm_to_vmem [thread:$0]  %s0, 64, %s16, [#allocation3], 32, 32, 2
    $region5: #{tpu_custom_call.1} parent=1 // pred_fallthru
      _
    // Predicated region
    $region6: #{tpu_custom_call.1} parent=1 // pred_check
      _
    $region7: #{tpu_custom_call.1} parent=1 // pred_check_branch
      %23 = sbr.rel (0) target = $region9
    $region8: #{tpu_custom_call.1} parent=1 // pred_region
      %s25 = ssub.s32 32, 32
      %26 = vsyncadd [#allocation6], %s25
      %s28 = sshll.u32 [#allocation5], 4
      %s29 = int_to_ptr.vmem [resolvable:$true] %s28
      %31 = dma.hbm_to_vmem [thread:$0]  %s1, 32, %s29, [#allocation6]
    $region9: #{tpu_custom_call.1} parent=1 // pred_fallthru
      _
    // Predicated region
    $region10: #{tpu_custom_call.1} parent=1 // pred_check
      _
    $region11: #{tpu_custom_call.1} parent=1 // pred_check_branch
      %33 = sbr.rel (0) target = $region13
    $region12: #{tpu_custom_call.1} parent=1 // pred_region
      %34 = dma.done [#allocation3], 64
    $region13: #{tpu_custom_call.1} parent=1 // pred_fallthru
      _
    // Predicated region
    $region14: #{tpu_custom_call.1} parent=1 // pred_check
      _
    $region15: #{tpu_custom_call.1} parent=1 // pred_check_branch
      %36 = sbr.rel (0) target = $region17
    $region16: #{tpu_custom_call.1} parent=1 // pred_region
      %37 = dma.done [#allocation6], 32
    $region17: #{tpu_custom_call.1} parent=1 // pred_fallthru
      _
    %v38 = vld [vmem:[#allocation2] sm:$0x3]
    %v39 = vld [vmem:[#allocation2 + $0x2] sm:$0x3]
    %v40 = vld [vmem:[#allocation5] sm:$0x3]
    %v41 = vadd.f32 %v38, %v40
    %v42 = vadd.f32 %v39, %v40
    %v43 = vlaneseq
    %vm44 = vcmp.ge.s32.totalorder %v43, 0
    %vm45 = vcmp.lt.s32.totalorder %v43, 256
    %vm46 = vmand %vm44, %vm45
    %47 = vst.msk [vmem:[#allocation7] sm:$0x3] %vm46, %v41
    %48 = vst.msk [vmem:[#allocation7 + $0x2] sm:$0x3] %vm46, %v42
    // Predicated region
    $region18: #{tpu_custom_call.1} parent=1 // pred_check
      _
    $region19: #{tpu_custom_call.1} parent=1 // pred_check_branch
      %50 = sbr.rel (0) target = $region21
    $region20: #{tpu_custom_call.1} parent=1 // pred_region
      %s52 = ssub.s32 64, 64
      %53 = vsyncadd [#allocation4], %s52
      %s54 = sshll.u32 [#allocation7], 4
      %s55 = int_to_ptr.vmem [resolvable:$true] %s54
      %60 = dma.vmem_to_hbm [thread:$0]  %s55, 64, %s2, [#allocation4], 32, 32, 2
    $region21: #{tpu_custom_call.1} parent=1 // pred_fallthru
      _
    // Predicated region
    $region22: #{tpu_custom_call.1} parent=1 // pred_check
      _
    $region23: #{tpu_custom_call.1} parent=1 // pred_check_branch
      %62 = sbr.rel (0) target = $region25
    $region24: #{tpu_custom_call.1} parent=1 // pred_region
      %63 = dma.done [#allocation4], 64
    $region25: #{tpu_custom_call.1} parent=1 // pred_fallthru
      _
    %64 = vsyncpa [#allocation3], 1
    %65 = vsyncpa [#allocation6], 1
    %66 = vsyncpa [#allocation4], 1

</llo_original>
